<compile_context>
chip_gen: v7x
topology: tpu7x:2x2x1
jax: 0.10.0
libtpu: 0.0.40
codegen_flags: <defaults>
</compile_context>

<pallas_src>
import jax
import jax.numpy as jnp
from jax.experimental import pallas as pl
from jax.experimental.pallas import tpu as pltpu

BIG_TILE = 2048   # rows per grid step for large N (amortizes per-step overhead)
VPU_K_MAX = 8     # first-layer K at/below this uses VPU broadcast FMAs


# ----------------------------- helpers -----------------------------

def _round_up(x, m):
    return ((x + m - 1) // m) * m


def _row_tiling(n):
    """Return (padded_N, tile).  Small N -> single grid step, no pipeline."""
    if n <= BIG_TILE:
        tile = _round_up(max(n, 8), 8)
        return tile, tile
    return _round_up(n, BIG_TILE), BIG_TILE


def _pad_rows(a, n_pad):
    n = a.shape[0]
    if n_pad == n:
        return a
    return jnp.pad(a, ((0, n_pad - n), (0, 0)))


def _const_spec(shape):
    # whole (small) parameter array resident every grid step (constant index map)
    return pl.BlockSpec(shape, lambda i: tuple(0 for _ in shape))


def _maybe_bf16(x):
    return x if x.dtype == jnp.bfloat16 else x.astype(jnp.bfloat16)


def _first_layer_math(x, w0, b0):
    """relu(x @ W0 + b0). Tiny K -> VPU broadcast FMAs; else MXU matmul."""
    k = x.shape[1]
    if k <= VPU_K_MAX:
        h = b0
        for f in range(k):                      # K is static & tiny (coord dim)
            h = h + x[:, f:f + 1] * w0[f:f + 1, :]
    else:
        h = jnp.dot(x, w0, preferred_element_type=jnp.float32) + b0
    return jnp.maximum(h, 0.0)


# ----------------------------- Pallas kernels -----------------------------

def _other_layers_kernel(t_ref, w1_ref, b1_ref, w2_ref, b2_ref, o_ref):
    # other_layers(table_tile):  relu(t @ W1 + b1) @ W2 + b2
    t = _maybe_bf16(t_ref[...])
    h = jnp.dot(t, w1_ref[...], preferred_element_type=jnp.float32)
    h = jnp.maximum(h + b1_ref[...], 0.0)
    y = jnp.dot(_maybe_bf16(h), w2_ref[...],
                preferred_element_type=jnp.float32) + b2_ref[...]
    o_ref[...] = y.astype(o_ref.dtype)


def _first_layer_kernel(x_ref, w0_ref, b0_ref, o_ref):
    # first_layer(x_tile): relu(x @ W0 + b0)
    h = _first_layer_math(x_ref[...], w0_ref[...], b0_ref[...])
    o_ref[...] = h.astype(o_ref.dtype)


def _full_mlp_kernel(x_ref, w0_ref, b0_ref, w1_ref, b1_ref, w2_ref, b2_ref, o_ref):
    # phase 2 fused path:  other_layers(first_layer(x))
    h0 = _first_layer_math(x_ref[...], w0_ref[...], b0_ref[...])
    h1 = jnp.dot(_maybe_bf16(h0), w1_ref[...], preferred_element_type=jnp.float32)
    h1 = jnp.maximum(h1 + b1_ref[...], 0.0)
    y = jnp.dot(_maybe_bf16(h1), w2_ref[...],
                preferred_element_type=jnp.float32) + b2_ref[...]
    o_ref[...] = y.astype(o_ref.dtype)


# ----------------------------- pallas_call wrappers -----------------------------

def other_layers_forward(t, w1, b1, w2, b2):
    """relu(t @ w1 + b1) @ w2 + b2.  Pass bf16 w1/w2 (and optionally bf16 t)."""
    n, h = t.shape
    h2 = w1.shape[1]
    o = w2.shape[1]
    n_pad, tile = _row_tiling(n)
    t_p = _pad_rows(t, n_pad)

    y = pl.pallas_call(
        _other_layers_kernel,
        out_shape=jax.ShapeDtypeStruct((n_pad, o), jnp.float32),
        grid_spec=pltpu.PrefetchScalarGridSpec(
            num_scalar_prefetch=0,
            grid=(n_pad // tile,),
            in_specs=[
                pl.BlockSpec((tile, h), lambda i: (i, 0)),
                _const_spec((h, h2)),
                _const_spec((1, h2)),
                _const_spec((h2, o)),
                _const_spec((1, o)),
            ],
            out_specs=pl.BlockSpec((tile, o), lambda i: (i, 0)),
        ),
        compiler_params=pltpu.CompilerParams(dimension_semantics=("parallel",)),
    )(t_p, w1, b1, w2, b2)
    return y if n_pad == n else y[:n]


def first_layer_forward(x, w0, b0):
    """relu(x @ w0 + b0) with the true hidden width in the output (no lane pad)."""
    n, f = x.shape
    h = w0.shape[1]
    n_pad, tile = _row_tiling(n)
    x_p = _pad_rows(x, n_pad)

    y = pl.pallas_call(
        _first_layer_kernel,
        out_shape=jax.ShapeDtypeStruct((n_pad, h), jnp.float32),
        grid_spec=pltpu.PrefetchScalarGridSpec(
            num_scalar_prefetch=0,
            grid=(n_pad // tile,),
            in_specs=[
                pl.BlockSpec((tile, f), lambda i: (i, 0)),
                _const_spec((f, h)),
                _const_spec((1, h)),
            ],
            out_specs=pl.BlockSpec((tile, h), lambda i: (i, 0)),
        ),
        compiler_params=pltpu.CompilerParams(dimension_semantics=("parallel",)),
    )(x_p, w0, b0)
    return y if n_pad == n else y[:n]


def full_forward(x, w0, b0, w1, b1, w2, b2):
    """other_layers(first_layer(x)) fused in one kernel.  Pass bf16 w1/w2."""
    n, f = x.shape
    h = w0.shape[1]
    h2 = w1.shape[1]
    o = w2.shape[1]
    n_pad, tile = _row_tiling(n)
    x_p = _pad_rows(x, n_pad)

    y = pl.pallas_call(
        _full_mlp_kernel,
        out_shape=jax.ShapeDtypeStruct((n_pad, o), jnp.float32),
        grid_spec=pltpu.PrefetchScalarGridSpec(
            num_scalar_prefetch=0,
            grid=(n_pad // tile,),
            in_specs=[
                pl.BlockSpec((tile, f), lambda i: (i, 0)),
                _const_spec((f, h)),
                _const_spec((1, h)),
                _const_spec((h, h2)),
                _const_spec((1, h2)),
                _const_spec((h2, o)),
                _const_spec((1, o)),
            ],
            out_specs=pl.BlockSpec((tile, o), lambda i: (i, 0)),
        ),
        compiler_params=pltpu.CompilerParams(dimension_semantics=("parallel",)),
    )(x_p, w0, b0, w1, b1, w2, b2)
    return y if n_pad == n else y[:n]


# ----------------------------- Module wrapper -----------------------------

class AuxModelBackupPallas:
    """JAX/Pallas reimplementation of AuxModel_backup's forward pass."""

    def __init__(self, key, *, in_features, out_features, hidden, num_coords):
        self.phase = 0
        self.in_features = in_features
        self.out_features = out_features
        self.first_layer_out_features = hidden

        ks = jax.random.split(key, 7)

        def linear_init(kw, kb, fan_in, fan_out):
            bound = 1.0 / jnp.sqrt(jnp.float32(fan_in))
            w = jax.random.uniform(kw, (fan_in, fan_out), jnp.float32, -bound, bound)
            b = jax.random.uniform(kb, (1, fan_out), jnp.float32, -bound, bound)
            return w, b

        # first_layer: Linear(in_features, hidden) + ReLU
        self.w0, self.b0 = linear_init(ks[0], ks[1], in_features, hidden)
        # other_layers: Linear(hidden, hidden)+ReLU, Linear(hidden, out_features)
        self.w1, self.b1 = linear_init(ks[2], ks[3], hidden, hidden)
        self.w2, self.b2 = linear_init(ks[4], ks[5], hidden, out_features)

        # self.table = 0.0001 * (rand(num_coords, hidden) * 2 - 1)
        self.table = 0.0001 * (
            jax.random.uniform(ks[6], (num_coords, hidden), jnp.float32) * 2.0 - 1.0
        )

        # cached, pre-cast parameters for the MXU path (done once, not per call)
        self.w1_bf16 = self.w1.astype(jnp.bfloat16)
        self.w2_bf16 = self.w2.astype(jnp.bfloat16)
        self.table_bf16 = self.table.astype(jnp.bfloat16)

    def __call__(self, x):
        out = {}
        if self.phase == 0:
            out["y"] = other_layers_forward(
                self.table_bf16, self.w1_bf16, self.b1, self.w2_bf16, self.b2
            )
        elif self.phase == 1:
            out["y1"] = first_layer_forward(x, self.w0, self.b0)
            out["table"] = self.table
        elif self.phase == 2:
            out["y"] = full_forward(
                x, self.w0, self.b0, self.w1_bf16, self.b1, self.w2_bf16, self.b2
            )
        return out


# ----------------------------- reference (plain JAX, f32) -----------------------------

def _ref_other_layers(t, w1, b1, w2, b2):
    h = jnp.maximum(t @ w1 + b1, 0.0)
    return h @ w2 + b2


def _ref_first_layer(x, w0, b0):
    return jnp.maximum(x @ w0 + b0, 0.0)


if __name__ == "__main__":
    key = jax.random.PRNGKey(0)
    k_model, k_x, k_big = jax.random.split(key, 3)

    IN_FEATURES = 2     # coordinate dimensionality
    OUT_FEATURES = 3    # RGB
    HIDDEN = 32         # first_layer_out_features
    NUM_COORDS = 256    # e.g. a 16x16 image flattened to coordinates

    model = AuxModelBackupPallas(
        k_model,
        in_features=IN_FEATURES,
        out_features=OUT_FEATURES,
        hidden=HIDDEN,
        num_coords=NUM_COORDS,
    )

    x = jax.random.uniform(k_x, (NUM_COORDS, IN_FEATURES), jnp.float32)

    # phase 0: y = other_layers(table)   (bf16 MXU inputs, f32 accumulation)
    model.phase = 0
    out0 = model(x)
    y0 = jax.block_until_ready(out0["y"])
    ref0 = _ref_other_layers(model.table, model.w1, model.b1, model.w2, model.b2)
    assert y0.shape == (NUM_COORDS, OUT_FEATURES)
    assert jnp.allclose(y0, ref0, atol=1e-2, rtol=1e-2)

    # phase 1: y1 = first_layer(x) (pure f32 VPU path), table passthrough
    model.phase = 1
    out1 = model(x)
    y1 = jax.block_until_ready(out1["y1"])
    ref1 = _ref_first_layer(x, model.w0, model.b0)
    assert y1.shape == (NUM_COORDS, HIDDEN)
    assert jnp.allclose(y1, ref1, atol=1e-5, rtol=1e-5)
    assert out1["table"].shape == (NUM_COORDS, HIDDEN)

    # phase 2: y = other_layers(first_layer(x))
    model.phase = 2
    out2 = model(x)
    y2 = jax.block_until_ready(out2["y"])
    ref2 = _ref_other_layers(ref1, model.w1, model.b1, model.w2, model.b2)
    assert y2.shape == (NUM_COORDS, OUT_FEATURES)
    assert jnp.allclose(y2, ref2, atol=5e-2, rtol=5e-2)

    # ragged-N path (row padding, single grid step)
    t_ragged = model.table_bf16[:250]
    y_r = jax.block_until_ready(
        other_layers_forward(t_ragged, model.w1_bf16, model.b1,
                             model.w2_bf16, model.b2)
    )
    ref_r = _ref_other_layers(model.table[:250], model.w1, model.b1,
                              model.w2, model.b2)
    assert y_r.shape == (250, OUT_FEATURES)
    assert jnp.allclose(y_r, ref_r, atol=1e-2, rtol=1e-2)

    # multi-step pipelined path (N > BIG_TILE, padded tail tile, >=2 grid steps)
    N_BIG = 2500
    x_big = jax.random.uniform(k_big, (N_BIG, IN_FEATURES), jnp.float32)
    y_big = jax.block_until_ready(
        full_forward(x_big, model.w0, model.b0, model.w1_bf16, model.b1,
                     model.w2_bf16, model.b2)
    )
    ref_big = _ref_other_layers(
        _ref_first_layer(x_big, model.w0, model.b0),
        model.w1, model.b1, model.w2, model.b2,
    )
    assert y_big.shape == (N_BIG, OUT_FEATURES)
    assert jnp.allclose(y_big, ref_big, atol=5e-2, rtol=5e-2)

    print("KERNEL_OK")
</pallas_src>

<mosaic_0001>
module attributes {stable_mosaic.version = 11 : i64} {
  func.func @_other_layers_kernel(%arg0: i32, %arg1: memref<256x32xbf16, #tpu.memory_space<vmem>>, %arg2: memref<32x32xbf16, #tpu.memory_space<vmem>>, %arg3: memref<1x32xf32, #tpu.memory_space<vmem>>, %arg4: memref<32x3xbf16, #tpu.memory_space<vmem>>, %arg5: memref<1x3xf32, #tpu.memory_space<vmem>>, %arg6: memref<256x3xf32, #tpu.memory_space<vmem>>) attributes {dimension_semantics = [#tpu.dimension_semantics<parallel>], iteration_bounds = array<i64: 1>, scalar_prefetch = 0 : i64, scratch_operands = 0 : i64, tpu.core_type = #tpu.core_type<tc>, window_params = [{transform_indices = @transform_0, window_bounds = array<i64: 256, 32>}, {pipeline_mode = #tpu.pipeline_mode<synchronous>, transform_indices = @transform_1, window_bounds = array<i64: 32, 32>}, {pipeline_mode = #tpu.pipeline_mode<synchronous>, transform_indices = @transform_2, window_bounds = array<i64: 1, 32>}, {pipeline_mode = #tpu.pipeline_mode<synchronous>, transform_indices = @transform_3, window_bounds = array<i64: 32, 3>}, {pipeline_mode = #tpu.pipeline_mode<synchronous>, transform_indices = @transform_4, window_bounds = array<i64: 1, 3>}, {transform_indices = @transform_5, window_bounds = array<i64: 256, 3>}]} {
    %c0 = arith.constant 0 : index
    %c0_0 = arith.constant 0 : index
    %0 = vector.load %arg1[%c0, %c0_0] : memref<256x32xbf16, #tpu.memory_space<vmem>>, vector<256x32xbf16>
    %c0_1 = arith.constant 0 : index
    %c0_2 = arith.constant 0 : index
    %1 = vector.load %arg2[%c0_1, %c0_2] : memref<32x32xbf16, #tpu.memory_space<vmem>>, vector<32x32xbf16>
    %cst = arith.constant dense<0.000000e+00> : vector<256x32xf32>
    %2 = tpu.matmul %0, %1, %cst {dimension_numbers = #tpu.dot_dimension_numbers<[1], [0], [0], [1], [0, 0, 1, 1], [], []>} : vector<256x32xbf16>, vector<32x32xbf16>, vector<256x32xf32> -> vector<256x32xf32>
    %c0_3 = arith.constant 0 : index
    %c0_4 = arith.constant 0 : index
    %3 = vector.load %arg3[%c0_3, %c0_4] : memref<1x32xf32, #tpu.memory_space<vmem>>, vector<1x32xf32>
    %4 = vector.broadcast %3 : vector<1x32xf32> to vector<256x32xf32>
    %5 = arith.addf %2, %4 : vector<256x32xf32>
    %cst_5 = arith.constant 0.000000e+00 : f32
    %6 = vector.broadcast %cst_5 : f32 to vector<256x32xf32>
    %7 = arith.maximumf %5, %6 : vector<256x32xf32>
    %8 = arith.truncf %7 : vector<256x32xf32> to vector<256x32xbf16>
    %c0_6 = arith.constant 0 : index
    %c0_7 = arith.constant 0 : index
    %9 = vector.load %arg4[%c0_6, %c0_7] : memref<32x3xbf16, #tpu.memory_space<vmem>>, vector<32x3xbf16>
    %cst_8 = arith.constant dense<0.000000e+00> : vector<256x3xf32>
    %10 = tpu.matmul %8, %9, %cst_8 {dimension_numbers = #tpu.dot_dimension_numbers<[1], [0], [0], [1], [0, 0, 1, 1], [], []>} : vector<256x32xbf16>, vector<32x3xbf16>, vector<256x3xf32> -> vector<256x3xf32>
    %c0_9 = arith.constant 0 : index
    %c0_10 = arith.constant 0 : index
    %11 = vector.load %arg5[%c0_9, %c0_10] : memref<1x3xf32, #tpu.memory_space<vmem>>, vector<1x3xf32>
    %12 = vector.broadcast %11 : vector<1x3xf32> to vector<256x3xf32>
    %13 = arith.addf %10, %12 : vector<256x3xf32>
    %c0_11 = arith.constant 0 : index
    %c0_12 = arith.constant 0 : index
    %14 = vector.load %arg6[%c0_11, %c0_12] : memref<256x3xf32, #tpu.memory_space<vmem>>, vector<256x3xf32>
    tpu.vector_store %arg6[%c0_11, %c0_12], %13 {strides = array<i32>} : memref<256x3xf32, #tpu.memory_space<vmem>>, vector<256x3xf32>,
    return
  }
  func.func @transform_0(%arg0: i32) -> (i32, i32) {
    %c0_i32 = arith.constant 0 : i32
    %c0_i32_0 = arith.constant 0 : i32
    return %arg0, %c0_i32 : i32, i32
  }
  func.func @transform_1(%arg0: i32) -> (i32, i32) {
    %c0_i32 = arith.constant 0 : i32
    %c0_i32_0 = arith.constant 0 : i32
    %c0_i32_1 = arith.constant 0 : i32
    return %c0_i32, %c0_i32_0 : i32, i32
  }
  func.func @transform_2(%arg0: i32) -> (i32, i32) {
    %c0_i32 = arith.constant 0 : i32
    %c0_i32_0 = arith.constant 0 : i32
    %c0_i32_1 = arith.constant 0 : i32
    return %c0_i32, %c0_i32_0 : i32, i32
  }
  func.func @transform_3(%arg0: i32) -> (i32, i32) {
    %c0_i32 = arith.constant 0 : i32
    %c0_i32_0 = arith.constant 0 : i32
    %c0_i32_1 = arith.constant 0 : i32
    return %c0_i32, %c0_i32_0 : i32, i32
  }
  func.func @transform_4(%arg0: i32) -> (i32, i32) {
    %c0_i32 = arith.constant 0 : i32
    %c0_i32_0 = arith.constant 0 : i32
    %c0_i32_1 = arith.constant 0 : i32
    return %c0_i32, %c0_i32_0 : i32, i32
  }
  func.func @transform_5(%arg0: i32) -> (i32, i32) {
    %c0_i32 = arith.constant 0 : i32
    %c0_i32_0 = arith.constant 0 : i32
    return %arg0, %c0_i32 : i32, i32
  }
}

</mosaic_0001>

<llo_original>
// kernel: tpu_custom_call.1
$region0: #{tpu_custom_call.1}
  #allocation0 [shape = 'u32[]', space=smem, size = 0x4, offset = 0x4, fixed_abs, tag = 'smem constant byte address 0x4 - core index']
  #allocation1 [shape = 'u32[144,128]{1,0:T(1,128)}', space=vmem, size = 0x12000, scoped, tag = 'internal scratch']
  %s0 = inlined_call_operand.vmem [shape: bf16[256,32], index: 0, kind: input, shape index: {}]
  %s1 = inlined_call_operand.vmem [shape: bf16[32,32], index: 1, kind: input, shape index: {}]
  %s2 = inlined_call_operand.vmem [shape: f32[1,32], index: 2, kind: input, shape index: {}]
  %s3 = inlined_call_operand.vmem [shape: bf16[32,3], index: 3, kind: input, shape index: {}]
  %s4 = inlined_call_operand.vmem [shape: f32[1,3], index: 4, kind: input, shape index: {}]
  %s5 = inlined_call_operand.vmem [shape: f32[256,3], index: 5, kind: output, shape index: {}]
  %s6 = sld [smem:[#allocation0]]
  $region30: #{tpu_custom_call.1} parent=0
    _
  %s8 = ssub.s32 1, %s6
  %s9 = scalar_select 0, %s8, %s6
  // Predicated region
  $region2: #{tpu_custom_call.1} parent=0 // pred_check
    _
  $region3: #{tpu_custom_call.1} parent=0 // pred_check_branch
    %11 = sbr.rel (0) target = $region5
  $region4: #{tpu_custom_call.1} parent=0 // pred_region
    _
  $region5: #{tpu_custom_call.1} parent=0 // pred_fallthru
    _
  // Predicated region
  $region6: #{tpu_custom_call.1} parent=0 // pred_check
    _
  $region7: #{tpu_custom_call.1} parent=0 // pred_check_branch
    %13 = sbr.rel (0) target = $region9
  $region8: #{tpu_custom_call.1} parent=0 // pred_region
    _
  $region9: #{tpu_custom_call.1} parent=0 // pred_fallthru
    _
  // Predicated region
  $region10: #{tpu_custom_call.1} parent=0 // pred_check
    _
  $region11: #{tpu_custom_call.1} parent=0 // pred_check_branch
    %15 = sbr.rel (0) target = $region13
  $region12: #{tpu_custom_call.1} parent=0 // pred_region
    _
  $region13: #{tpu_custom_call.1} parent=0 // pred_fallthru
    _
  // Predicated region
  $region14: #{tpu_custom_call.1} parent=0 // pred_check
    _
  $region15: #{tpu_custom_call.1} parent=0 // pred_check_branch
    %17 = sbr.rel (0) target = $region17
  $region16: #{tpu_custom_call.1} parent=0 // pred_region
    _
  $region17: #{tpu_custom_call.1} parent=0 // pred_fallthru
    _
  // Predicated region
  $region18: #{tpu_custom_call.1} parent=0 // pred_check
    _
  $region19: #{tpu_custom_call.1} parent=0 // pred_check_branch
    %19 = sbr.rel (0) target = $region21
  $region20: #{tpu_custom_call.1} parent=0 // pred_region
    _
  $region21: #{tpu_custom_call.1} parent=0 // pred_fallthru
    _
  %v21 = vld [vmem:[%s0] sm:$0xf]
  %v22 = vld [vmem:[%s0 + $0x4] sm:$0xf]
  %v23 = vld [vmem:[%s0 + $0x8] sm:$0xf]
  %v24 = vld [vmem:[%s0 + $0xc] sm:$0xf]
  %v25 = vld [vmem:[%s0 + $0x10] sm:$0xf]
  %v26 = vld [vmem:[%s0 + $0x14] sm:$0xf]
  %v27 = vld [vmem:[%s0 + $0x18] sm:$0xf]
  %v28 = vld [vmem:[%s0 + $0x1c] sm:$0xf]
  %v29 = vld [vmem:[%s0 + $0x20] sm:$0xf]
  %v30 = vld [vmem:[%s0 + $0x24] sm:$0xf]
  %v31 = vld [vmem:[%s0 + $0x28] sm:$0xf]
  %v32 = vld [vmem:[%s0 + $0x2c] sm:$0xf]
  %v33 = vld [vmem:[%s0 + $0x30] sm:$0xf]
  %v34 = vld [vmem:[%s0 + $0x34] sm:$0xf]
  %v35 = vld [vmem:[%s0 + $0x38] sm:$0xf]
  %v36 = vld [vmem:[%s0 + $0x3c] sm:$0xf]
  %v37 = vld [vmem:[%s0 + $0x40] sm:$0xf]
  %v38 = vld [vmem:[%s0 + $0x44] sm:$0xf]
  %v39 = vld [vmem:[%s0 + $0x48] sm:$0xf]
  %v40 = vld [vmem:[%s0 + $0x4c] sm:$0xf]
  %v41 = vld [vmem:[%s0 + $0x50] sm:$0xf]
  %v42 = vld [vmem:[%s0 + $0x54] sm:$0xf]
  %v43 = vld [vmem:[%s0 + $0x58] sm:$0xf]
  %v44 = vld [vmem:[%s0 + $0x5c] sm:$0xf]
  %v45 = vld [vmem:[%s0 + $0x60] sm:$0xf]
  %v46 = vld [vmem:[%s0 + $0x64] sm:$0xf]
  %v47 = vld [vmem:[%s0 + $0x68] sm:$0xf]
  %v48 = vld [vmem:[%s0 + $0x6c] sm:$0xf]
  %v49 = vld [vmem:[%s0 + $0x70] sm:$0xf]
  %v50 = vld [vmem:[%s0 + $0x74] sm:$0xf]
  %v51 = vld [vmem:[%s0 + $0x78] sm:$0xf]
  %v52 = vld [vmem:[%s0 + $0x7c] sm:$0xf]
  %v53 = vld [vmem:[%s1] sm:$0xf]
  %v54 = vld [vmem:[%s1 + $0x4] sm:$0xf]
  %v55 = vld [vmem:[%s1 + $0x8] sm:$0xf]
  %v56 = vld [vmem:[%s1 + $0xc] sm:$0xf]
  %v57 = vld [vmem:[%s2] sm:$0x1]
  %v59 = vlaneseq
  %v60 = vshrl.u32 %v59, 7
  %v61 = vsub.s32 0, %v60
  %v62 = vrot.slane %v57, %v61
  %v96 = vunpack.c.l.b16 %v21
  %v97 = vunpack.c.l.b16 %v22
  %v98 = vunpack.c.l.b16 %v23
  %v99 = vunpack.c.l.b16 %v24
  %v100 = vunpack.c.l.b16 %v25
  %v101 = vunpack.c.l.b16 %v26
  %v102 = vunpack.c.l.b16 %v27
  %v103 = vunpack.c.l.b16 %v28
  %v104 = vunpack.c.l.b16 %v29
  %v105 = vunpack.c.l.b16 %v30
  %v106 = vunpack.c.l.b16 %v31
  %v107 = vunpack.c.l.b16 %v32
  %v108 = vunpack.c.l.b16 %v33
  %v109 = vunpack.c.l.b16 %v34
  %v110 = vunpack.c.l.b16 %v35
  %v111 = vunpack.c.l.b16 %v36
  %v112 = vunpack.c.l.b16 %v37
  %v113 = vunpack.c.l.b16 %v38
  %v114 = vunpack.c.l.b16 %v39
  %v115 = vunpack.c.l.b16 %v40
  %v116 = vunpack.c.l.b16 %v41
  %v117 = vunpack.c.l.b16 %v42
  %v118 = vunpack.c.l.b16 %v43
  %v119 = vunpack.c.l.b16 %v44
  %v120 = vunpack.c.l.b16 %v45
  %v121 = vunpack.c.l.b16 %v46
  %v122 = vunpack.c.l.b16 %v47
  %v123 = vunpack.c.l.b16 %v48
  %v124 = vunpack.c.l.b16 %v49
  %v125 = vunpack.c.l.b16 %v50
  %v126 = vunpack.c.l.b16 %v51
  %v127 = vunpack.c.l.b16 %v52
  %v128 = vpack.c.b16 %v97, %v96
  %v129 = vpack.c.b16 %v99, %v98
  %v130 = vpack.c.b16 %v101, %v100
  %v131 = vpack.c.b16 %v103, %v102
  %v132 = vpack.c.b16 %v105, %v104
  %v133 = vpack.c.b16 %v107, %v106
  %v134 = vpack.c.b16 %v109, %v108
  %v135 = vpack.c.b16 %v111, %v110
  %v136 = vpack.c.b16 %v113, %v112
  %v137 = vpack.c.b16 %v115, %v114
  %v138 = vpack.c.b16 %v117, %v116
  %v139 = vpack.c.b16 %v119, %v118
  %v140 = vpack.c.b16 %v121, %v120
  %v141 = vpack.c.b16 %v123, %v122
  %v142 = vpack.c.b16 %v125, %v124
  %v143 = vpack.c.b16 %v127, %v126
  %v148 = vunpack.c.l.b16 %v53
  %v149 = vunpack.c.l.b16 %v54
  %v150 = vunpack.c.l.b16 %v55
  %v151 = vunpack.c.l.b16 %v56
  %v152 = vpack.c.b16 %v149, %v148
  %v153 = vpack.c.b16 %v151, %v150
  %vm156 = vcmask 261120
  %v158 = vsel %vm156, %v128, 0
  %v161 = vsel %vm156, %v129, 0
  %v164 = vsel %vm156, %v130, 0
  %v167 = vsel %vm156, %v131, 0
  %v170 = vsel %vm156, %v132, 0
  %v173 = vsel %vm156, %v133, 0
  %v176 = vsel %vm156, %v134, 0
  %v179 = vsel %vm156, %v135, 0
  %v182 = vsel %vm156, %v136, 0
  %v185 = vsel %vm156, %v137, 0
  %v188 = vsel %vm156, %v138, 0
  %v191 = vsel %vm156, %v139, 0
  %v194 = vsel %vm156, %v140, 0
  %v197 = vsel %vm156, %v141, 0
  %v200 = vsel %vm156, %v142, 0
  %v203 = vsel %vm156, %v143, 0
  %205 = vmatprep.subr.bf16.mxu0 0
  %206 = vmatpush1.bf16.msra.mxu0 %v152
  %207 = vmatprep.subr.bf16.mxu0 0
  %208 = vmatpush1.bf16.msra.mxu0 %v153
  %209 = vmatprep.subr.bf16.mxu0 0
  %210 = vmatpush1.bf16.msra.mxu0 0
  %211 = vmatprep.subr.bf16.mxu0 0
  %212 = vmatpush1.bf16.msra.mxu0 0
  %213 = vmatprep.subr.bf16.mxu0 0
  %214 = vmatpush1.bf16.msra.mxu0 0
  %215 = vmatprep.subr.bf16.mxu0 0
  %216 = vmatpush1.bf16.msra.mxu0 0
  %217 = vmatprep.subr.bf16.mxu0 0
  %218 = vmatpush1.bf16.msra.mxu0 0
  %219 = vmatprep.subr.bf16.mxu0 0
  %220 = vmatpush1.bf16.msra.mxu0 0
  %221 = vmatprep.subr.bf16.mxu0 0
  %222 = vmatpush1.bf16.msra.mxu0 0
  %223 = vmatprep.subr.bf16.mxu0 0
  %224 = vmatpush1.bf16.msra.mxu0 0
  %225 = vmatprep.subr.bf16.mxu0 0
  %226 = vmatpush1.bf16.msra.mxu0 0
  %227 = vmatprep.subr.bf16.mxu0 0
  %228 = vmatpush1.bf16.msra.mxu0 0
  %229 = vmatprep.subr.bf16.mxu0 0
  %230 = vmatpush1.bf16.msra.mxu0 0
  %231 = vmatprep.subr.bf16.mxu0 0
  %232 = vmatpush1.bf16.msra.mxu0 0
  %233 = vmatprep.subr.bf16.mxu0 0
  %234 = vmatpush1.bf16.msra.mxu0 0
  %235 = vmatprep.subr.bf16.mxu0 0
  %236 = vmatpush1.bf16.msra.mxu0 0
  %237 = vmatprep.mubr.bf16.mxu0 0
  %238 = vmatmul.mubr.bf16.gmra.mrb[0].mxu0 %v158
  %v239 = vpop.f32.mrb[0].mxu0
  %v240 = vadd.f32 %v62, %v239
  %v241 = vpop.f32.mrb[0].mxu0
  %v242 = vpop.f32.mrb[0].mxu0
  %v243 = vadd.f32 %v62, %v242
  %v244 = vpop.f32.mrb[0].mxu0
  %245 = vmatprep.mubr.bf16.mxu0 0
  %246 = vmatmul.mubr.bf16.gmra.mrb[0].mxu0 %v161
  %v247 = vpop.f32.mrb[0].mxu0
  %v248 = vadd.f32 %v62, %v247
  %v249 = vpop.f32.mrb[0].mxu0
  %v250 = vpop.f32.mrb[0].mxu0
  %v251 = vadd.f32 %v62, %v250
  %v252 = vpop.f32.mrb[0].mxu0
  %253 = vmatprep.mubr.bf16.mxu0 0
  %254 = vmatmul.mubr.bf16.gmra.mrb[0].mxu0 %v164
  %v255 = vpop.f32.mrb[0].mxu0
  %v256 = vadd.f32 %v62, %v255
  %v257 = vpop.f32.mrb[0].mxu0
  %v258 = vpop.f32.mrb[0].mxu0
  %v259 = vadd.f32 %v62, %v258
  %v260 = vpop.f32.mrb[0].mxu0
  %261 = vmatprep.mubr.bf16.mxu0 0
  %262 = vmatmul.mubr.bf16.gmra.mrb[0].mxu0 %v167
  %v263 = vpop.f32.mrb[0].mxu0
  %v264 = vadd.f32 %v62, %v263
  %v265 = vpop.f32.mrb[0].mxu0
  %v266 = vpop.f32.mrb[0].mxu0
  %v267 = vadd.f32 %v62, %v266
  %v268 = vpop.f32.mrb[0].mxu0
  %269 = vmatprep.mubr.bf16.mxu0 0
  %270 = vmatmul.mubr.bf16.gmra.mrb[0].mxu0 %v170
  %v271 = vpop.f32.mrb[0].mxu0
  %v272 = vadd.f32 %v62, %v271
  %v273 = vpop.f32.mrb[0].mxu0
  %v274 = vpop.f32.mrb[0].mxu0
  %v275 = vadd.f32 %v62, %v274
  %v276 = vpop.f32.mrb[0].mxu0
  %277 = vmatprep.mubr.bf16.mxu0 0
  %278 = vmatmul.mubr.bf16.gmra.mrb[0].mxu0 %v173
  %v279 = vpop.f32.mrb[0].mxu0
  %v280 = vadd.f32 %v62, %v279
  %v281 = vpop.f32.mrb[0].mxu0
  %v282 = vpop.f32.mrb[0].mxu0
  %v283 = vadd.f32 %v62, %v282
  %v284 = vpop.f32.mrb[0].mxu0
  %285 = vmatprep.mubr.bf16.mxu0 0
  %286 = vmatmul.mubr.bf16.gmra.mrb[0].mxu0 %v176
  %v287 = vpop.f32.mrb[0].mxu0
  %v288 = vadd.f32 %v62, %v287
  %v289 = vpop.f32.mrb[0].mxu0
  %v290 = vpop.f32.mrb[0].mxu0
  %v291 = vadd.f32 %v62, %v290
  %v292 = vpop.f32.mrb[0].mxu0
  %293 = vmatprep.mubr.bf16.mxu0 0
  %294 = vmatmul.mubr.bf16.gmra.mrb[0].mxu0 %v179
  %v295 = vpop.f32.mrb[0].mxu0
  %v296 = vadd.f32 %v62, %v295
  %v297 = vpop.f32.mrb[0].mxu0
  %v298 = vpop.f32.mrb[0].mxu0
  %v299 = vadd.f32 %v62, %v298
  %v300 = vpop.f32.mrb[0].mxu0
  %301 = vmatprep.mubr.bf16.mxu0 0
  %302 = vmatmul.mubr.bf16.gmra.mrb[0].mxu0 %v182
  %v303 = vpop.f32.mrb[0].mxu0
  %v304 = vadd.f32 %v62, %v303
  %v305 = vpop.f32.mrb[0].mxu0
  %v306 = vpop.f32.mrb[0].mxu0
  %v307 = vadd.f32 %v62, %v306
  %v308 = vpop.f32.mrb[0].mxu0
  %309 = vmatprep.mubr.bf16.mxu0 0
  %310 = vmatmul.mubr.bf16.gmra.mrb[0].mxu0 %v185
  %v311 = vpop.f32.mrb[0].mxu0
  %v312 = vadd.f32 %v62, %v311
  %v313 = vpop.f32.mrb[0].mxu0
  %v314 = vpop.f32.mrb[0].mxu0
  %v315 = vadd.f32 %v62, %v314
  %v316 = vpop.f32.mrb[0].mxu0
  %317 = vmatprep.mubr.bf16.mxu0 0
  %318 = vmatmul.mubr.bf16.gmra.mrb[0].mxu0 %v188
  %v319 = vpop.f32.mrb[0].mxu0
  %v320 = vadd.f32 %v62, %v319
  %v321 = vpop.f32.mrb[0].mxu0
  %v322 = vpop.f32.mrb[0].mxu0
  %v323 = vadd.f32 %v62, %v322
  %v324 = vpop.f32.mrb[0].mxu0
  %325 = vmatprep.mubr.bf16.mxu0 0
  %326 = vmatmul.mubr.bf16.gmra.mrb[0].mxu0 %v191
  %v327 = vpop.f32.mrb[0].mxu0
  %v328 = vadd.f32 %v62, %v327
  %v329 = vpop.f32.mrb[0].mxu0
  %v330 = vpop.f32.mrb[0].mxu0
  %v331 = vadd.f32 %v62, %v330
  %v332 = vpop.f32.mrb[0].mxu0
  %333 = vmatprep.mubr.bf16.mxu0 0
  %334 = vmatmul.mubr.bf16.gmra.mrb[0].mxu0 %v194
  %v335 = vpop.f32.mrb[0].mxu0
  %v336 = vadd.f32 %v62, %v335
  %v337 = vpop.f32.mrb[0].mxu0
  %v338 = vpop.f32.mrb[0].mxu0
  %v339 = vadd.f32 %v62, %v338
  %v340 = vpop.f32.mrb[0].mxu0
  %341 = vmatprep.mubr.bf16.mxu0 0
  %342 = vmatmul.mubr.bf16.gmra.mrb[0].mxu0 %v197
  %v343 = vpop.f32.mrb[0].mxu0
  %v344 = vadd.f32 %v62, %v343
  %v345 = vpop.f32.mrb[0].mxu0
  %v346 = vpop.f32.mrb[0].mxu0
  %v347 = vadd.f32 %v62, %v346
  %v348 = vpop.f32.mrb[0].mxu0
  %349 = vmatprep.mubr.bf16.mxu0 0
  %350 = vmatmul.mubr.bf16.gmra.mrb[0].mxu0 %v200
  %v351 = vpop.f32.mrb[0].mxu0
  %v352 = vadd.f32 %v62, %v351
  %v353 = vpop.f32.mrb[0].mxu0
  %v354 = vpop.f32.mrb[0].mxu0
  %v355 = vadd.f32 %v62, %v354
  %v356 = vpop.f32.mrb[0].mxu0
  %357 = vmatprep.mubr.bf16.mxu0 0
  %358 = vmatmul.mubr.bf16.gmra.mrb[0].mxu0 %v203
  %v359 = vpop.f32.mrb[0].mxu0
  %v360 = vadd.f32 %v62, %v359
  %v361 = vpop.f32.mrb[0].mxu0
  %v362 = vpop.f32.mrb[0].mxu0
  %v363 = vadd.f32 %v62, %v362
  %v364 = vpop.f32.mrb[0].mxu0
  %365 = vdwg.mxu0
  %v366 = vmax.f32 %v240, 0.0
  %v367 = vmax.f32 %v243, 0.0
  %v368 = vmax.f32 %v248, 0.0
  %v369 = vmax.f32 %v251, 0.0
  %v370 = vmax.f32 %v256, 0.0
  %v371 = vmax.f32 %v259, 0.0
  %v372 = vmax.f32 %v264, 0.0
  %v373 = vmax.f32 %v267, 0.0
  %v374 = vmax.f32 %v272, 0.0
  %v375 = vmax.f32 %v275, 0.0
  %v376 = vmax.f32 %v280, 0.0
  %v377 = vmax.f32 %v283, 0.0
  %v378 = vmax.f32 %v288, 0.0
  %v379 = vmax.f32 %v291, 0.0
  %v380 = vmax.f32 %v296, 0.0
  %v381 = vmax.f32 %v299, 0.0
  %v382 = vmax.f32 %v304, 0.0
  %v383 = vmax.f32 %v307, 0.0
  %v384 = vmax.f32 %v312, 0.0
  %v385 = vmax.f32 %v315, 0.0
  %v386 = vmax.f32 %v320, 0.0
  %v387 = vmax.f32 %v323, 0.0
  %v388 = vmax.f32 %v328, 0.0
  %v389 = vmax.f32 %v331, 0.0
  %v390 = vmax.f32 %v336, 0.0
  %v391 = vmax.f32 %v339, 0.0
  %v392 = vmax.f32 %v344, 0.0
  %v393 = vmax.f32 %v347, 0.0
  %v394 = vmax.f32 %v352, 0.0
  %v395 = vmax.f32 %v355, 0.0
  %v396 = vmax.f32 %v360, 0.0
  %v397 = vmax.f32 %v363, 0.0
  %v398 = vpack.c.bf16 %v367, %v366
  %v399 = vpack.c.bf16 %v369, %v368
  %v400 = vpack.c.bf16 %v371, %v370
  %v401 = vpack.c.bf16 %v373, %v372
  %v402 = vpack.c.bf16 %v375, %v374
  %v403 = vpack.c.bf16 %v377, %v376
  %v404 = vpack.c.bf16 %v379, %v378
  %v405 = vpack.c.bf16 %v381, %v380
  %v406 = vpack.c.bf16 %v383, %v382
  %v407 = vpack.c.bf16 %v385, %v384
  %v408 = vpack.c.bf16 %v387, %v386
  %v409 = vpack.c.bf16 %v389, %v388
  %v410 = vpack.c.bf16 %v391, %v390
  %v411 = vpack.c.bf16 %v393, %v392
  %v412 = vpack.c.bf16 %v395, %v394
  %v413 = vpack.c.bf16 %v397, %v396
  %v414 = vld [vmem:[%s3] sm:$0xf]
  %v415 = vld [vmem:[%s3 + $0x4] sm:$0xf]
  %v416 = vld [vmem:[%s3 + $0x8] sm:$0xf]
  %v417 = vld [vmem:[%s3 + $0xc] sm:$0xf]
  %v418 = vld [vmem:[%s4] sm:$0x1]
  %v420 = vlaneseq
  %v421 = vshrl.u32 %v420, 7
  %v422 = vsub.s32 0, %v421
  %v423 = vrot.slane %v418, %v422
  %v429 = vunpack.c.l.b16 %v414
  %v430 = vunpack.c.l.b16 %v415
  %v431 = vunpack.c.l.b16 %v416
  %v432 = vunpack.c.l.b16 %v417
  %v433 = vpack.c.b16 %v430, %v429
  %v434 = vpack.c.b16 %v432, %v431
  %v438 = vsel %vm156, %v398, 0
  %v441 = vsel %vm156, %v399, 0
  %v444 = vsel %vm156, %v400, 0
  %v447 = vsel %vm156, %v401, 0
  %v450 = vsel %vm156, %v402, 0
  %v453 = vsel %vm156, %v403, 0
  %v456 = vsel %vm156, %v404, 0
  %v459 = vsel %vm156, %v405, 0
  %v462 = vsel %vm156, %v406, 0
  %v465 = vsel %vm156, %v407, 0
  %v468 = vsel %vm156, %v408, 0
  %v471 = vsel %vm156, %v409, 0
  %v474 = vsel %vm156, %v410, 0
  %v477 = vsel %vm156, %v411, 0
  %v480 = vsel %vm156, %v412, 0
  %v483 = vsel %vm156, %v413, 0
  %485 = vmatprep.subr.bf16.mxu0 0
  %486 = vmatpush1.bf16.msra.mxu0 %v433
  %487 = vmatprep.subr.bf16.mxu0 0
  %488 = vmatpush1.bf16.msra.mxu0 %v434
  %489 = vmatprep.subr.bf16.mxu0 0
  %490 = vmatpush1.bf16.msra.mxu0 0
  %491 = vmatprep.subr.bf16.mxu0 0
  %492 = vmatpush1.bf16.msra.mxu0 0
  %493 = vmatprep.subr.bf16.mxu0 0
  %494 = vmatpush1.bf16.msra.mxu0 0
  %495 = vmatprep.subr.bf16.mxu0 0
  %496 = vmatpush1.bf16.msra.mxu0 0
  %497 = vmatprep.subr.bf16.mxu0 0
  %498 = vmatpush1.bf16.msra.mxu0 0
  %499 = vmatprep.subr.bf16.mxu0 0
  %500 = vmatpush1.bf16.msra.mxu0 0
  %501 = vmatprep.subr.bf16.mxu0 0
  %502 = vmatpush1.bf16.msra.mxu0 0
  %503 = vmatprep.subr.bf16.mxu0 0
  %504 = vmatpush1.bf16.msra.mxu0 0
  %505 = vmatprep.subr.bf16.mxu0 0
  %506 = vmatpush1.bf16.msra.mxu0 0
  %507 = vmatprep.subr.bf16.mxu0 0
  %508 = vmatpush1.bf16.msra.mxu0 0
  %509 = vmatprep.subr.bf16.mxu0 0
  %510 = vmatpush1.bf16.msra.mxu0 0
  %511 = vmatprep.subr.bf16.mxu0 0
  %512 = vmatpush1.bf16.msra.mxu0 0
  %513 = vmatprep.subr.bf16.mxu0 0
  %514 = vmatpush1.bf16.msra.mxu0 0
  %515 = vmatprep.subr.bf16.mxu0 0
  %516 = vmatpush1.bf16.msra.mxu0 0
  %517 = vmatprep.mubr.bf16.mxu0 0
  %518 = vmatmul.mubr.bf16.gmra.mrb[0].mxu0 %v438
  %v519 = vpop.f32.mrb[0].mxu0
  %v520 = vadd.f32 %v423, %v519
  %v521 = vpop.f32.mrb[0].mxu0
  %v522 = vpop.f32.mrb[0].mxu0
  %v523 = vadd.f32 %v423, %v522
  %v524 = vpop.f32.mrb[0].mxu0
  %525 = vmatprep.mubr.bf16.mxu0 0
  %526 = vmatmul.mubr.bf16.gmra.mrb[0].mxu0 %v441
  %v527 = vpop.f32.mrb[0].mxu0
  %v528 = vadd.f32 %v423, %v527
  %v529 = vpop.f32.mrb[0].mxu0
  %v530 = vpop.f32.mrb[0].mxu0
  %v531 = vadd.f32 %v423, %v530
  %v532 = vpop.f32.mrb[0].mxu0
  %533 = vmatprep.mubr.bf16.mxu0 0
  %534 = vmatmul.mubr.bf16.gmra.mrb[0].mxu0 %v444
  %v535 = vpop.f32.mrb[0].mxu0
  %v536 = vadd.f32 %v423, %v535
  %v537 = vpop.f32.mrb[0].mxu0
  %v538 = vpop.f32.mrb[0].mxu0
  %v539 = vadd.f32 %v423, %v538
  %v540 = vpop.f32.mrb[0].mxu0
  %541 = vmatprep.mubr.bf16.mxu0 0
  %542 = vmatmul.mubr.bf16.gmra.mrb[0].mxu0 %v447
  %v543 = vpop.f32.mrb[0].mxu0
  %v544 = vadd.f32 %v423, %v543
  %v545 = vpop.f32.mrb[0].mxu0
  %v546 = vpop.f32.mrb[0].mxu0
  %v547 = vadd.f32 %v423, %v546
  %v548 = vpop.f32.mrb[0].mxu0
  %549 = vmatprep.mubr.bf16.mxu0 0
  %550 = vmatmul.mubr.bf16.gmra.mrb[0].mxu0 %v450
  %v551 = vpop.f32.mrb[0].mxu0
  %v552 = vadd.f32 %v423, %v551
  %v553 = vpop.f32.mrb[0].mxu0
  %v554 = vpop.f32.mrb[0].mxu0
  %v555 = vadd.f32 %v423, %v554
  %v556 = vpop.f32.mrb[0].mxu0
  %557 = vmatprep.mubr.bf16.mxu0 0
  %558 = vmatmul.mubr.bf16.gmra.mrb[0].mxu0 %v453
  %v559 = vpop.f32.mrb[0].mxu0
  %v560 = vadd.f32 %v423, %v559
  %v561 = vpop.f32.mrb[0].mxu0
  %v562 = vpop.f32.mrb[0].mxu0
  %v563 = vadd.f32 %v423, %v562
  %v564 = vpop.f32.mrb[0].mxu0
  %565 = vmatprep.mubr.bf16.mxu0 0
  %566 = vmatmul.mubr.bf16.gmra.mrb[0].mxu0 %v456
  %v567 = vpop.f32.mrb[0].mxu0
  %v568 = vadd.f32 %v423, %v567
  %v569 = vpop.f32.mrb[0].mxu0
  %v570 = vpop.f32.mrb[0].mxu0
  %v571 = vadd.f32 %v423, %v570
  %v572 = vpop.f32.mrb[0].mxu0
  %573 = vmatprep.mubr.bf16.mxu0 0
  %574 = vmatmul.mubr.bf16.gmra.mrb[0].mxu0 %v459
  %v575 = vpop.f32.mrb[0].mxu0
  %v576 = vadd.f32 %v423, %v575
  %v577 = vpop.f32.mrb[0].mxu0
  %v578 = vpop.f32.mrb[0].mxu0
  %v579 = vadd.f32 %v423, %v578
  %v580 = vpop.f32.mrb[0].mxu0
  %581 = vmatprep.mubr.bf16.mxu0 0
  %582 = vmatmul.mubr.bf16.gmra.mrb[0].mxu0 %v462
  %v583 = vpop.f32.mrb[0].mxu0
  %v584 = vadd.f32 %v423, %v583
  %v585 = vpop.f32.mrb[0].mxu0
  %v586 = vpop.f32.mrb[0].mxu0
  %v587 = vadd.f32 %v423, %v586
  %v588 = vpop.f32.mrb[0].mxu0
  %589 = vmatprep.mubr.bf16.mxu0 0
  %590 = vmatmul.mubr.bf16.gmra.mrb[0].mxu0 %v465
  %v591 = vpop.f32.mrb[0].mxu0
  %v592 = vadd.f32 %v423, %v591
  %v593 = vpop.f32.mrb[0].mxu0
  %v594 = vpop.f32.mrb[0].mxu0
  %v595 = vadd.f32 %v423, %v594
  %v596 = vpop.f32.mrb[0].mxu0
  %597 = vmatprep.mubr.bf16.mxu0 0
  %598 = vmatmul.mubr.bf16.gmra.mrb[0].mxu0 %v468
  %v599 = vpop.f32.mrb[0].mxu0
  %v600 = vadd.f32 %v423, %v599
  %v601 = vpop.f32.mrb[0].mxu0
  %v602 = vpop.f32.mrb[0].mxu0
  %v603 = vadd.f32 %v423, %v602
  %v604 = vpop.f32.mrb[0].mxu0
  %605 = vmatprep.mubr.bf16.mxu0 0
  %606 = vmatmul.mubr.bf16.gmra.mrb[0].mxu0 %v471
  %v607 = vpop.f32.mrb[0].mxu0
  %v608 = vadd.f32 %v423, %v607
  %v609 = vpop.f32.mrb[0].mxu0
  %v610 = vpop.f32.mrb[0].mxu0
  %v611 = vadd.f32 %v423, %v610
  %v612 = vpop.f32.mrb[0].mxu0
  %613 = vmatprep.mubr.bf16.mxu0 0
  %614 = vmatmul.mubr.bf16.gmra.mrb[0].mxu0 %v474
  %v615 = vpop.f32.mrb[0].mxu0
  %v616 = vadd.f32 %v423, %v615
  %v617 = vpop.f32.mrb[0].mxu0
  %v618 = vpop.f32.mrb[0].mxu0
  %v619 = vadd.f32 %v423, %v618
  %v620 = vpop.f32.mrb[0].mxu0
  %621 = vmatprep.mubr.bf16.mxu0 0
  %622 = vmatmul.mubr.bf16.gmra.mrb[0].mxu0 %v477
  %v623 = vpop.f32.mrb[0].mxu0
  %v624 = vadd.f32 %v423, %v623
  %v625 = vpop.f32.mrb[0].mxu0
  %v626 = vpop.f32.mrb[0].mxu0
  %v627 = vadd.f32 %v423, %v626
  %v628 = vpop.f32.mrb[0].mxu0
  %629 = vmatprep.mubr.bf16.mxu0 0
  %630 = vmatmul.mubr.bf16.gmra.mrb[0].mxu0 %v480
  %v631 = vpop.f32.mrb[0].mxu0
  %v632 = vadd.f32 %v423, %v631
  %v633 = vpop.f32.mrb[0].mxu0
  %v634 = vpop.f32.mrb[0].mxu0
  %v635 = vadd.f32 %v423, %v634
  %v636 = vpop.f32.mrb[0].mxu0
  %637 = vmatprep.mubr.bf16.mxu0 0
  %638 = vmatmul.mubr.bf16.gmra.mrb[0].mxu0 %v483
  %v639 = vpop.f32.mrb[0].mxu0
  %v640 = vadd.f32 %v423, %v639
  %v641 = vpop.f32.mrb[0].mxu0
  %v642 = vpop.f32.mrb[0].mxu0
  %v643 = vadd.f32 %v423, %v642
  %v644 = vpop.f32.mrb[0].mxu0
  %645 = vdwg.mxu0
  %vm646 = vcmask 23552
  %647 = vst.msk [vmem:[%s5] sm:$0xff] %vm646, %v520
  %648 = vst.msk [vmem:[%s5 + $0x8] sm:$0xff] %vm646, %v523
  %649 = vst.msk [vmem:[%s5 + $0x10] sm:$0xff] %vm646, %v528
  %650 = vst.msk [vmem:[%s5 + $0x18] sm:$0xff] %vm646, %v531
  %651 = vst.msk [vmem:[%s5 + $0x20] sm:$0xff] %vm646, %v536
  %652 = vst.msk [vmem:[%s5 + $0x28] sm:$0xff] %vm646, %v539
  %653 = vst.msk [vmem:[%s5 + $0x30] sm:$0xff] %vm646, %v544
  %654 = vst.msk [vmem:[%s5 + $0x38] sm:$0xff] %vm646, %v547
  %655 = vst.msk [vmem:[%s5 + $0x40] sm:$0xff] %vm646, %v552
  %656 = vst.msk [vmem:[%s5 + $0x48] sm:$0xff] %vm646, %v555
  %657 = vst.msk [vmem:[%s5 + $0x50] sm:$0xff] %vm646, %v560
  %658 = vst.msk [vmem:[%s5 + $0x58] sm:$0xff] %vm646, %v563
  %659 = vst.msk [vmem:[%s5 + $0x60] sm:$0xff] %vm646, %v568
  %660 = vst.msk [vmem:[%s5 + $0x68] sm:$0xff] %vm646, %v571
  %661 = vst.msk [vmem:[%s5 + $0x70] sm:$0xff] %vm646, %v576
  %662 = vst.msk [vmem:[%s5 + $0x78] sm:$0xff] %vm646, %v579
  %663 = vst.msk [vmem:[%s5 + $0x80] sm:$0xff] %vm646, %v584
  %664 = vst.msk [vmem:[%s5 + $0x88] sm:$0xff] %vm646, %v587
  %665 = vst.msk [vmem:[%s5 + $0x90] sm:$0xff] %vm646, %v592
  %666 = vst.msk [vmem:[%s5 + $0x98] sm:$0xff] %vm646, %v595
  %667 = vst.msk [vmem:[%s5 + $0xa0] sm:$0xff] %vm646, %v600
  %668 = vst.msk [vmem:[%s5 + $0xa8] sm:$0xff] %vm646, %v603
  %669 = vst.msk [vmem:[%s5 + $0xb0] sm:$0xff] %vm646, %v608
  %670 = vst.msk [vmem:[%s5 + $0xb8] sm:$0xff] %vm646, %v611
  %671 = vst.msk [vmem:[%s5 + $0xc0] sm:$0xff] %vm646, %v616
  %672 = vst.msk [vmem:[%s5 + $0xc8] sm:$0xff] %vm646, %v619
  %673 = vst.msk [vmem:[%s5 + $0xd0] sm:$0xff] %vm646, %v624
  %674 = vst.msk [vmem:[%s5 + $0xd8] sm:$0xff] %vm646, %v627
  %675 = vst.msk [vmem:[%s5 + $0xe0] sm:$0xff] %vm646, %v632
  %676 = vst.msk [vmem:[%s5 + $0xe8] sm:$0xff] %vm646, %v635
  %677 = vst.msk [vmem:[%s5 + $0xf0] sm:$0xff] %vm646, %v640
  %678 = vst.msk [vmem:[%s5 + $0xf8] sm:$0xff] %vm646, %v643
  // Predicated region
  $region22: #{tpu_custom_call.1} parent=0 // pred_check
    _
  $region23: #{tpu_custom_call.1} parent=0 // pred_check_branch
    %680 = sbr.rel (0) target = $region25
  $region24: #{tpu_custom_call.1} parent=0 // pred_region
    _
  $region25: #{tpu_custom_call.1} parent=0 // pred_fallthru
    _
  // Predicated region
  $region26: #{tpu_custom_call.1} parent=0 // pred_check
    _
  $region27: #{tpu_custom_call.1} parent=0 // pred_check_branch
    %682 = sbr.rel (0) target = $region29
  $region28: #{tpu_custom_call.1} parent=0 // pred_region
    _
  $region29: #{tpu_custom_call.1} parent=0 // pred_fallthru
    _

</llo_original>
